<compile_context>
chip_gen: v7x
topology: tpu7x:2x2x1
jax: 0.10.0
libtpu: 0.0.40
codegen_flags: <defaults>
</compile_context>

<pallas_src>
import functools

import jax
import jax.numpy as jnp
from jax.experimental import pallas as pl
from jax.experimental.pallas import tpu as pltpu


# ----------------------------------------------------------------------------
# Kernels: out[b] = Wg @ g[b]  (+ Wu @ u[b] on the with_inputs path)
# Channels on sublanes, spatial (H*W) on lanes -> weight (Cout, Cin) is the MXU
# LHS with no transposes anywhere.  Batch block is unrolled (small, static).
# ----------------------------------------------------------------------------
def _dynamics_kernel(wg_ref, g_ref, o_ref):
    wg = wg_ref[...]
    for i in range(g_ref.shape[0]):                 # static unroll over batch block
        gi = g_ref[i].astype(wg.dtype)              # in-kernel operand cast (no HBM cost)
        o_ref[i] = jnp.dot(wg, gi,
                           preferred_element_type=jnp.float32).astype(o_ref.dtype)


def _dynamics_with_u_kernel(wg_ref, wu_ref, g_ref, u_ref, o_ref):
    wg = wg_ref[...]
    wu = wu_ref[...]
    for i in range(g_ref.shape[0]):
        acc = jnp.dot(wg, g_ref[i].astype(wg.dtype),
                      preferred_element_type=jnp.float32)
        acc = acc + jnp.dot(wu, u_ref[i].astype(wu.dtype),
                            preferred_element_type=jnp.float32)
        o_ref[i] = acc.astype(o_ref.dtype)


# ----------------------------------------------------------------------------
# Generation-aware block planning
# ----------------------------------------------------------------------------
def _round_up(x, m):
    return ((x + m - 1) // m) * m


def _vmem_limit_bytes():
    """Scoped-VMEM limit: half of physical, capped at 64 MiB (v7x has only 64 MiB)."""
    try:
        info = pltpu.get_tpu_info()
        phys = int(getattr(info, "vmem_capacity_bytes", 0)) or (64 << 20)
    except Exception:  # CPU interpret / unknown platform -> conservative default
        phys = 64 << 20
    return max(16 << 20, min(phys // 2, 64 << 20))


def _plan_blocks(n, cg, cu, hw, itemsize, budget_bytes, max_unroll=16):
    """Pick (batch block, spatial tile) so double-buffered blocks fit the budget."""
    ch = 2 * cg + cu                       # channels moved per lane column: g-in + out (+ u)
    per_col = 2 * ch * itemsize            # x2: Pallas double-buffers every BlockSpec
    max_cols = max(128, budget_bytes // per_col)

    if hw <= max_cols:
        # Small spatial extent: take all of HW and block the batch axis too so each
        # grid step moves enough bytes to hit HBM streaming rate.
        t = hw
        b_blk = max(1, min(n, max_unroll, max_cols // hw))
    else:
        # Large spatial extent: one batch item per step, widest multiple-of-128 tile.
        b_blk = 1
        t = min(hw, (max_cols // 128) * 128)

    # Guarantee >=2 grid steps (when the problem permits) so both TensorCores are
    # used on multi-core chips (v7x); costs ~0.35us extra elsewhere -> negligible.
    if pl.cdiv(n, b_blk) * pl.cdiv(hw, t) < 2:
        if n >= 2:
            b_blk = -(-n // 2)                       # ceil(n/2) -> two batch blocks
        elif hw > 128:
            t = _round_up(-(-hw // 2), 128)          # split HW into two lane-dense tiles
    return b_blk, t


# ----------------------------------------------------------------------------
# Wrapper: Dynamics.forward
# ----------------------------------------------------------------------------
@functools.partial(jax.jit, static_argnames=("with_inputs", "mxu_bf16"))
def dynamics_forward(g, main_w, main_u_w=None, u=None, *, with_inputs=False,
                     mxu_bf16=False):
    """Pallas implementation of Dynamics.forward.

    g:        (N, g_dim, H, W)      NCHW, any float dtype (pass bf16 for ~2x input BW).
    main_w:   (g_dim, g_dim, 1, 1)  main_dynamics conv weight.
    main_u_w: (g_dim, u_dim, 1, 1)  main_u_dynamics conv weight (with_inputs path).
    u:        (N, u_dim, H, W) or None.
    mxu_bf16: cast MXU operands to bf16 inside the kernel (f32 accumulate, output keeps
              g.dtype). No extra HBM traffic; only useful if the matmul ever binds.
    """
    n, cg, h, w = g.shape
    hw = h * w
    out_dtype = g.dtype
    operand_dtype = jnp.bfloat16 if mxu_bf16 else g.dtype

    # Free reshape (contiguous) -- no transposes, no wrapper-side dtype casts on data.
    g3 = g.reshape(n, cg, hw)
    wg = main_w[:, :, 0, 0].astype(operand_dtype)    # (Cout, Cin), used directly as LHS

    # Matches the PyTorch guard `if self.with_inputs and u is not None:`
    use_u = bool(with_inputs) and (u is not None)
    cu = u.shape[1] if use_u else 0
    itemsize = jnp.dtype(g.dtype).itemsize

    vmem_limit = _vmem_limit_bytes()
    budget = int(vmem_limit * 0.6)                   # headroom: weights, sems, scratch
    b_blk, t = _plan_blocks(n, cg, cu, hw, itemsize, budget)

    grid = (pl.cdiv(n, b_blk), pl.cdiv(hw, t))
    data_spec = pl.BlockSpec((b_blk, cg, t), lambda b, j: (b, 0, j))
    out_spec = pl.BlockSpec((b_blk, cg, t), lambda b, j: (b, 0, j))
    wg_spec = pl.BlockSpec((cg, cg), lambda b, j: (0, 0))
    out_shape = jax.ShapeDtypeStruct((n, cg, hw), out_dtype)
    cparams = pltpu.CompilerParams(
        dimension_semantics=("parallel", "parallel"),
        vmem_limit_bytes=int(vmem_limit),
    )

    flops = 2 * n * cg * cg * hw + (2 * n * cg * cu * hw if use_u else 0)
    bytes_accessed = (g3.size * itemsize
                      + n * cg * hw * jnp.dtype(out_dtype).itemsize
                      + wg.size * jnp.dtype(operand_dtype).itemsize)

    if use_u:
        u3 = u.reshape(n, cu, hw)
        wu = main_u_w[:, :, 0, 0].astype(operand_dtype)          # (Cg, Cu)
        u_spec = pl.BlockSpec((b_blk, cu, t), lambda b, j: (b, 0, j))
        wu_spec = pl.BlockSpec((cg, cu), lambda b, j: (0, 0))
        bytes_accessed += (u3.size * jnp.dtype(u.dtype).itemsize
                           + wu.size * jnp.dtype(operand_dtype).itemsize)
        out3 = pl.pallas_call(
            _dynamics_with_u_kernel,
            out_shape=out_shape,
            grid_spec=pl.GridSpec(
                grid=grid,
                in_specs=[wg_spec, wu_spec, data_spec, u_spec],
                out_specs=out_spec,
            ),
            compiler_params=cparams,
            cost_estimate=pl.CostEstimate(flops=flops, transcendentals=0,
                                          bytes_accessed=bytes_accessed),
        )(wg, wu, g3, u3)
        # TODO(synk): the PyTorch per-head loop `for i in self.num_heads:` iterates over
        # an int and would raise TypeError; no defined semantics -> intentionally omitted.
    else:
        out3 = pl.pallas_call(
            _dynamics_kernel,
            out_shape=out_shape,
            grid_spec=pl.GridSpec(
                grid=grid,
                in_specs=[wg_spec, data_spec],
                out_specs=out_spec,
            ),
            compiler_params=cparams,
            cost_estimate=pl.CostEstimate(flops=flops, transcendentals=0,
                                          bytes_accessed=bytes_accessed),
        )(wg, g3)

    return out3.reshape(n, cg, h, w)


# ----------------------------------------------------------------------------
# Parameter construction (deterministic, synthetic)
# ----------------------------------------------------------------------------
def make_params(key, g_dim, u_dim, num_heads, with_inputs=False):
    """Synthetic deterministic parameters mirroring Dynamics.__init__ shapes."""
    n_heads = num_heads - 1
    k_main, k_main_u, k_heads_u = jax.random.split(key, 3)
    params = {}
    params["main_dynamics"] = (
        jax.random.normal(k_main, (g_dim, g_dim, 1, 1), jnp.float32) * 0.1)
    params["main_u_dynamics"] = (
        jax.random.normal(k_main_u, (g_dim, u_dim, 1, 1), jnp.float32) * 0.1)
    # self.dynamics[i]: weights initialized to 0.001 (unused in forward).
    params["dynamics"] = [jnp.full((g_dim, g_dim, 1, 1), 0.001, jnp.float32)
                          for _ in range(n_heads)]
    if with_inputs:
        ks = jax.random.split(k_heads_u, max(n_heads, 1))
        params["u_dynamics"] = [
            jax.random.normal(ks[i], (g_dim, u_dim, 1, 1), jnp.float32) * 0.1
            for i in range(n_heads)]
    return params


# ----------------------------------------------------------------------------
# Reference (pure JAX) for correctness checking
# ----------------------------------------------------------------------------
def dynamics_forward_ref(g, main_w, main_u_w=None, u=None, with_inputs=False):
    wg = main_w[:, :, 0, 0]                         # (Cout, Cin)
    out = jnp.einsum("nchw,oc->nohw", g, wg)
    if with_inputs and u is not None:
        wu = main_u_w[:, :, 0, 0]
        out = out + jnp.einsum("nchw,oc->nohw", u, wu)
    return out


# ----------------------------------------------------------------------------
# Main
# ----------------------------------------------------------------------------
if __name__ == "__main__":
    key = jax.random.PRNGKey(0)
    k_p, k_g, k_u = jax.random.split(key, 3)

    batch, g_dim, u_dim, spatial, num_heads = 2, 32, 16, 16, 3

    params = make_params(k_p, g_dim, u_dim, num_heads, with_inputs=True)
    g = jax.random.normal(k_g, (batch, g_dim, spatial, spatial), jnp.float32)
    u = jax.random.normal(k_u, (batch, u_dim, spatial, spatial), jnp.float32)

    # Default path: with_inputs=False, with_interactions=False -> g = main_dynamics(g)
    out = dynamics_forward(g, params["main_dynamics"], with_inputs=False)
    out = jax.block_until_ready(out)
    ref = dynamics_forward_ref(g, params["main_dynamics"], with_inputs=False)
    assert jnp.allclose(out, ref, atol=1e-5, rtol=1e-5), "default path mismatch"

    # with_inputs path: g = main_dynamics(g) + main_u_dynamics(u)
    out_u = dynamics_forward(g, params["main_dynamics"],
                             params["main_u_dynamics"], u, with_inputs=True)
    out_u = jax.block_until_ready(out_u)
    ref_u = dynamics_forward_ref(g, params["main_dynamics"],
                                 params["main_u_dynamics"], u, with_inputs=True)
    assert jnp.allclose(out_u, ref_u, atol=1e-5, rtol=1e-5), "with_inputs path mismatch"

    # In-kernel bf16 MXU-operand variant (f32 accumulate, f32 I/O, no extra HBM pass).
    out_bf = dynamics_forward(g, params["main_dynamics"],
                              params["main_u_dynamics"], u, with_inputs=True,
                              mxu_bf16=True)
    out_bf = jax.block_until_ready(out_bf)
    assert jnp.allclose(out_bf, ref_u, atol=3e-2, rtol=3e-2), "mxu_bf16 path mismatch"

    # Native bf16 input path (the true 2x bandwidth win: caller provides bf16 arrays).
    out_b16 = dynamics_forward(g.astype(jnp.bfloat16),
                               params["main_dynamics"],
                               params["main_u_dynamics"],
                               u.astype(jnp.bfloat16), with_inputs=True)
    out_b16 = jax.block_until_ready(out_b16)
    assert jnp.allclose(out_b16.astype(jnp.float32), ref_u, atol=5e-2, rtol=5e-2), \
        "bf16-input path mismatch"

    print("KERNEL_OK")
</pallas_src>

<mosaic_0001>
module attributes {stable_mosaic.version = 11 : i64} {
  func.func @_dynamics_kernel(%arg0: i32, %arg1: i32, %arg2: memref<32x32xf32, #tpu.memory_space<vmem>>, %arg3: memref<1x32x256xf32, #tpu.memory_space<vmem>>, %arg4: memref<1x32x256xf32, #tpu.memory_space<vmem>>) attributes {dimension_semantics = [#tpu.dimension_semantics<parallel>, #tpu.dimension_semantics<parallel>], iteration_bounds = array<i64: 2, 1>, scalar_prefetch = 0 : i64, scratch_operands = 0 : i64, tpu.core_type = #tpu.core_type<tc>, window_params = [{pipeline_mode = #tpu.pipeline_mode<synchronous>, transform_indices = @transform_0, window_bounds = array<i64: 32, 32>}, {transform_indices = @transform_1, window_bounds = array<i64: 1, 32, 256>}, {transform_indices = @transform_2, window_bounds = array<i64: 1, 32, 256>}]} {
    %c0 = arith.constant 0 : index
    %c0_0 = arith.constant 0 : index
    %0 = vector.load %arg2[%c0, %c0_0] : memref<32x32xf32, #tpu.memory_space<vmem>>, vector<32x32xf32>
    %c0_1 = arith.constant 0 : index
    %c0_2 = arith.constant 0 : index
    %c0_3 = arith.constant 0 : index
    %1 = vector.load %arg3[%c0_1, %c0_2, %c0_3] : memref<1x32x256xf32, #tpu.memory_space<vmem>>, vector<1x32x256xf32>
    %2 = vector.shape_cast %1 : vector<1x32x256xf32> to vector<32x256xf32>
    %cst = arith.constant dense<0.000000e+00> : vector<32x256xf32>
    %3 = tpu.matmul %0, %2, %cst {dimension_numbers = #tpu.dot_dimension_numbers<[1], [0], [0], [1], [0, 0, 1, 1], [], []>} : vector<32x32xf32>, vector<32x256xf32>, vector<32x256xf32> -> vector<32x256xf32>
    %c0_4 = arith.constant 0 : index
    %c0_5 = arith.constant 0 : index
    %c0_6 = arith.constant 0 : index
    %4 = vector.load %arg4[%c0_4, %c0_5, %c0_6] : memref<1x32x256xf32, #tpu.memory_space<vmem>>, vector<1x32x256xf32>
    %5 = vector.shape_cast %4 : vector<1x32x256xf32> to vector<32x256xf32>
    %6 = vector.shape_cast %3 : vector<32x256xf32> to vector<1x32x256xf32>
    tpu.vector_store %arg4[%c0_4, %c0_5, %c0_6], %6 {strides = array<i32>} : memref<1x32x256xf32, #tpu.memory_space<vmem>>, vector<1x32x256xf32>,
    return
  }
  func.func @transform_0(%arg0: i32, %arg1: i32) -> (i32, i32) {
    %c0_i32 = arith.constant 0 : i32
    %c0_i32_0 = arith.constant 0 : i32
    %c0_i32_1 = arith.constant 0 : i32
    return %c0_i32, %c0_i32_0 : i32, i32
  }
  func.func @transform_1(%arg0: i32, %arg1: i32) -> (i32, i32, i32) {
    %c0_i32 = arith.constant 0 : i32
    %c0_i32_0 = arith.constant 0 : i32
    return %arg0, %c0_i32, %arg1 : i32, i32, i32
  }
  func.func @transform_2(%arg0: i32, %arg1: i32) -> (i32, i32, i32) {
    %c0_i32 = arith.constant 0 : i32
    %c0_i32_0 = arith.constant 0 : i32
    return %arg0, %c0_i32, %arg1 : i32, i32, i32
  }
}

</mosaic_0001>

<llo_original>
// kernel: dynamics_forward.1
$region0: #{dynamics_forward.1}
  #allocation0 [shape = 'u32[]', space=smem, size = 0x4, offset = 0x4, fixed_abs, tag = 'smem constant byte address 0x4 - core index']
  #allocation1 [shape = 'u32[144,128]{1,0:T(1,128)}', space=vmem, size = 0x12000, scoped, tag = 'internal scratch']
  %s0 = inlined_call_operand.vmem [shape: f32[32,32], index: 0, kind: input, shape index: {}]
  %s1 = inlined_call_operand.vmem [shape: f32[2,32,256], index: 1, kind: input, shape index: {}]
  %s2 = inlined_call_operand.vmem [shape: f32[2,32,256], index: 2, kind: output, shape index: {}]
  %s3 = sld [smem:[#allocation0]]
  $region41: #{dynamics_forward.1} parent=0
    _
  %s5 = ssub.s32 1, %s3
  %s6 = scalar_select 0, %s5, %s3
  loop: start=0, step=1, limit=4
  $region2: #{dynamics_forward.1} parent=0 // loop_pre_header
    _
  $region3: #{dynamics_forward.1} parent=0 // loop_header
    %s8 = sphi 0, %s12
    %p9 = scmp.ge.s32.totalorder %s8, 4
    %s15 = sphi 0, %s27
    %s16 = sphi 0, %s23
    %s17 = sphi 0, %s15
    %s18 = sphi 0, %s16
    %s19 = sphi 0, %s17
    %s20 = sphi 0, %s18
    %s28 = sphi 0, %s28
    %s30 = sphi 0, %s28
    %s31 = sphi 0, %s30
    %s45 = sphi 0, %s31
    %s53 = sphi 0, %s55
    %s56 = sphi 0, %s53
    %s57 = sphi 0, %s56
    %s73 = sphi 0, %s57
    %s81 = sphi 0, %s83
    %s84 = sphi 0, %s81
    %s85 = sphi 0, %s84
    %s101 = sphi 0, %s85
  $region4: #{dynamics_forward.1} parent=0 // loop_header_branch
    %11 = sbr.rel (%p9) target = $region8
  $region5: #{dynamics_forward.1} parent=0 // loop_body
    %s13 = ssub.s32 %s8, 1
    %s14 = ssub.s32 %s8, 2
    %s21 = sadd.s32 1, %s16
    %p22 = scmp.ge.s32.totalorder %s21, 1
    %s23 = scalar_select %p22, 0, %s21
    %s24 = sadd.s32 1, %s15
    %s25 = scalar_select %p22, %s24, %s15
    %p26 = scmp.ge.s32.totalorder %s25, 2
    %s27 = scalar_select %p26, 0, %s25
    %s29 = sadd.s32 %s28, 1
    %p32 = scmp.eq.s32.totalorder %s8, 1
    %p33 = scmp.ne.s32.totalorder %s28, %s30
    %p34 = scmp.eq.s32.totalorder %s8, 0
    %p35 = por %p33, %p34
    %p36 = scmp.ne.s32.totalorder %s28, %s30
    %p37 = scmp.eq.s32.totalorder %s13, 1
    %p38 = por %p36, %p37
    %p39 = scmp.ne.s32.totalorder %s30, %s31
    %p40 = scmp.eq.s32.totalorder %s13, 0
    %p41 = por %p39, %p40
    %p42 = scmp.ne.s32.totalorder %s30, %s31
    %p43 = scmp.eq.s32.totalorder %s14, 1
    %p44 = por %p42, %p43
    %p46 = scmp.ne.s32.totalorder %s31, %s45
    %p47 = scmp.eq.s32.totalorder %s14, 0
    %p48 = por %p46, %p47
    %s49 = ssub.s32 %s15, %s27
    %s50 = ssub.s32 %s16, %s23
    %s51 = sor.u32 %s49, %s50
    %p52 = scmp.eq.s32.totalorder %s51, 0
    %s54 = sadd.s32 %s53, 1
    %s55 = scalar_select %p52, %s53, %s54
    %p58 = pneg %p52
    %p59 = scmp.eq.s32.totalorder %s8, 1
    %p60 = por %p58, %p59
    %p61 = scmp.ne.s32.totalorder %s53, %s56
    %p62 = scmp.eq.s32.totalorder %s8, 0
    %p63 = por %p61, %p62
    %p64 = scmp.ne.s32.totalorder %s53, %s56
    %p65 = scmp.eq.s32.totalorder %s13, 1
    %p66 = por %p64, %p65
    %p67 = scmp.ne.s32.totalorder %s56, %s57
    %p68 = scmp.eq.s32.totalorder %s13, 0
    %p69 = por %p67, %p68
    %p70 = scmp.ne.s32.totalorder %s56, %s57
    %p71 = scmp.eq.s32.totalorder %s14, 1
    %p72 = por %p70, %p71
    %p74 = scmp.ne.s32.totalorder %s57, %s73
    %p75 = scmp.eq.s32.totalorder %s14, 0
    %p76 = por %p74, %p75
    %s77 = ssub.s32 %s15, %s27
    %s78 = ssub.s32 %s16, %s23
    %s79 = sor.u32 %s77, %s78
    %p80 = scmp.eq.s32.totalorder %s79, 0
    %s82 = sadd.s32 %s81, 1
    %s83 = scalar_select %p80, %s81, %s82
    %p86 = pneg %p80
    %p87 = scmp.eq.s32.totalorder %s8, 1
    %p88 = por %p86, %p87
    %p89 = scmp.ne.s32.totalorder %s81, %s84
    %p90 = scmp.eq.s32.totalorder %s8, 0
    %p91 = por %p89, %p90
    %p92 = scmp.ne.s32.totalorder %s81, %s84
    %p93 = scmp.eq.s32.totalorder %s13, 1
    %p94 = por %p92, %p93
    %p95 = scmp.ne.s32.totalorder %s84, %s85
    %p96 = scmp.eq.s32.totalorder %s13, 0
    %p97 = por %p95, %p96
    %p98 = scmp.ne.s32.totalorder %s84, %s85
    %p99 = scmp.eq.s32.totalorder %s14, 1
    %p100 = por %p98, %p99
    %p102 = scmp.ne.s32.totalorder %s85, %s101
    %p103 = scmp.eq.s32.totalorder %s14, 0
    %p104 = por %p102, %p103
    %p105 = scmp.le.s32.totalorder 1, %s8
    %p106 = scmp.lt.s32.totalorder %s8, 3
    %p107 = pnand %p105, %p106
    %p108 = pneg %p107
    // Predicated region
    $region9: #{dynamics_forward.1} parent=5 // pred_check
      _
    $region10: #{dynamics_forward.1} parent=5 // pred_check_branch
      %110 = sbr.rel (%p107) target = $region12
    $region11: #{dynamics_forward.1} parent=5 // pred_region
      %s111 = ssub.s32 %s8, 1
      // Predicated region
      $region13: #{dynamics_forward.1} parent=11 // pred_check
        %p112 = pneg %p41
      $region14: #{dynamics_forward.1} parent=11 // pred_check_branch
        %114 = sbr.rel (%p112) target = $region16
      $region15: #{dynamics_forward.1} parent=11 // pred_region
        _
      $region16: #{dynamics_forward.1} parent=11 // pred_fallthru
        _
    $region12: #{dynamics_forward.1} parent=5 // pred_fallthru
      _
    %p115 = scmp.lt.s32.totalorder %s8, 2
    // Predicated region
    $region17: #{dynamics_forward.1} parent=5 // pred_check
      %p116 = pneg %p115
    $region18: #{dynamics_forward.1} parent=5 // pred_check_branch
      %118 = sbr.rel (%p116) target = $region20
    $region19: #{dynamics_forward.1} parent=5 // pred_region
      // Predicated region
      $region21: #{dynamics_forward.1} parent=19 // pred_check
        %p119 = pneg %p63
      $region22: #{dynamics_forward.1} parent=19 // pred_check_branch
        %121 = sbr.rel (%p119) target = $region24
      $region23: #{dynamics_forward.1} parent=19 // pred_region
        %s122 = smul.u32 2, %s16
        %p123 = scmp.lt.s32.totalorder %s15, 1
        %s124 = scalar_select %p123, %s15, 1
        %p125 = scmp.lt.s32.totalorder %s122, 1
        %s126 = scalar_select %p125, %s122, 1
        %s127 = smul.addr %s124, 8
        %s128 = sadd.s32 %s126, %s127
        %s129 = smul.addr %s128, 8
        %s130 = scalar_lea.vmem %s1, %s129
        %s131 = smul.u32 2, %s16
      $region24: #{dynamics_forward.1} parent=19 // pred_fallthru
        _
    $region20: #{dynamics_forward.1} parent=5 // pred_fallthru
      _
    %p132 = scmp.le.s32.totalorder 1, %s8
    %p133 = scmp.lt.s32.totalorder %s8, 3
    %p134 = pnand %p132, %p133
    %p135 = pneg %p134
    // Predicated region
    $region25: #{dynamics_forward.1} parent=5 // pred_check
      _
    $region26: #{dynamics_forward.1} parent=5 // pred_check_branch
      %137 = sbr.rel (%p134) target = $region28
    $region27: #{dynamics_forward.1} parent=5 // pred_region
      %s138 = ssub.s32 %s8, 1
      %p139 = pneg %p41
      %p140 = pneg %p38
      %s141 = smul.u32 2, %s18
      %p142 = scmp.lt.s32.totalorder %s17, 1
      %s143 = scalar_select %p142, %s17, 1
      %p144 = scmp.lt.s32.totalorder %s141, 1
      %s145 = scalar_select %p144, %s141, 1
      %s146 = smul.addr %s143, 8
      %s147 = sadd.s32 %s145, %s146
      %s148 = smul.addr %s147, 8
      %s149 = scalar_lea.vmem %s1, %s148
      %p150 = pneg %p69
      %p151 = pneg %p66
      %p152 = pneg %p97
      %p153 = pneg %p94
      %s154 = smul.u32 2, %s18
      %p155 = scmp.lt.s32.totalorder %s17, 1
      %s156 = scalar_select %p155, %s17, 1
      %p157 = scmp.lt.s32.totalorder %s154, 1
      %s158 = scalar_select %p157, %s154, 1
      %s159 = smul.addr %s156, 8
      %s160 = sadd.s32 %s158, %s159
      %s161 = smul.addr %s160, 8
      %s162 = scalar_lea.vmem %s2, %s161
      %s163 = smul.u32 2, %s18
      %p164 = scmp.lt.s32.totalorder %s17, 1
      %s165 = scalar_select %p164, %s17, 1
      %p166 = scmp.lt.s32.totalorder %s163, 1
      %s167 = scalar_select %p166, %s163, 1
      %s168 = smul.addr %s165, 8
      %s169 = sadd.s32 %s167, %s168
      %s170 = smul.addr %s169, 8
      %s171 = scalar_lea.vmem %s1, %s170
      %s172 = smul.u32 2, %s18
      %s173 = smul.u32 2, %s18
      %p174 = scmp.lt.s32.totalorder %s17, 1
      %s175 = scalar_select %p174, %s17, 1
      %p176 = scmp.lt.s32.totalorder %s173, 1
      %s177 = scalar_select %p176, %s173, 1
      %s178 = smul.addr %s175, 8
      %s179 = sadd.s32 %s177, %s178
      %s180 = smul.addr %s179, 8
      %s181 = scalar_lea.vmem %s2, %s180
      %s182 = smul.u32 2, %s18
      %v183 = vld [vmem:[%s0] sm:$0xff]
      %v184 = vld [vmem:[%s0 + $0x8] sm:$0xff]
      %v185 = vld [vmem:[%s0 + $0x10] sm:$0xff]
      %v186 = vld [vmem:[%s0 + $0x18] sm:$0xff]
      %v187 = vld [vmem:[%s171] sm:$0xff]
      %v188 = vld [vmem:[%s171 + $0x8] sm:$0xff]
      %v189 = vld [vmem:[%s171 + $0x10] sm:$0xff]
      %v190 = vld [vmem:[%s171 + $0x18] sm:$0xff]
      %v191 = vld [vmem:[%s171 + $0x20] sm:$0xff]
      %v192 = vld [vmem:[%s171 + $0x28] sm:$0xff]
      %v193 = vld [vmem:[%s171 + $0x30] sm:$0xff]
      %v194 = vld [vmem:[%s171 + $0x38] sm:$0xff]
      %vm195 = vcmask 261120
      %v197 = vsel %vm195, %v183, 0
      %v200 = vsel %vm195, %v184, 0
      %v203 = vsel %vm195, %v185, 0
      %v206 = vsel %vm195, %v186, 0
      %208 = vmatprep.subr.mxu0 %v188
      %209 = vmatpush1.msra.mxu0 %v187
      %210 = vmatprep.subr.mxu0 %v190
      %211 = vmatpush1.msra.mxu0 %v189
      %212 = vmatprep.subr.mxu0 %v192
      %213 = vmatpush1.msra.mxu0 %v191
      %214 = vmatprep.subr.mxu0 %v194
      %215 = vmatpush1.msra.mxu0 %v193
      %216 = vmatprep.subr.mxu0 0.0
      %217 = vmatpush1.msra.mxu0 0.0
      %218 = vmatprep.subr.mxu0 0.0
      %219 = vmatpush1.msra.mxu0 0.0
      %220 = vmatprep.subr.mxu0 0.0
      %221 = vmatpush1.msra.mxu0 0.0
      %222 = vmatprep.subr.mxu0 0.0
      %223 = vmatpush1.msra.mxu0 0.0
      %224 = vmatprep.subr.mxu0 0.0
      %225 = vmatpush1.msra.mxu0 0.0
      %226 = vmatprep.subr.mxu0 0.0
      %227 = vmatpush1.msra.mxu0 0.0
      %228 = vmatprep.subr.mxu0 0.0
      %229 = vmatpush1.msra.mxu0 0.0
      %230 = vmatprep.subr.mxu0 0.0
      %231 = vmatpush1.msra.mxu0 0.0
      %232 = vmatprep.subr.mxu0 0.0
      %233 = vmatpush1.msra.mxu0 0.0
      %234 = vmatprep.subr.mxu0 0.0
      %235 = vmatpush1.msra.mxu0 0.0
      %236 = vmatprep.subr.mxu0 0.0
      %237 = vmatpush1.msra.mxu0 0.0
      %238 = vmatprep.subr.mxu0 0.0
      %239 = vmatpush1.msra.mxu0 0.0
      %240 = vmatprep.subr.mxu0 0.0
      %241 = vmatpush1.msra.mxu0 0.0
      %242 = vmatprep.subr.mxu0 0.0
      %243 = vmatpush1.msra.mxu0 0.0
      %244 = vmatprep.subr.mxu0 0.0
      %245 = vmatpush1.msra.mxu0 0.0
      %246 = vmatprep.subr.mxu0 0.0
      %247 = vmatpush1.msra.mxu0 0.0
      %248 = vmatprep.subr.mxu0 0.0
      %249 = vmatpush1.msra.mxu0 0.0
      %250 = vmatprep.subr.mxu0 0.0
      %251 = vmatpush1.msra.mxu0 0.0
      %252 = vmatprep.subr.mxu0 0.0
      %253 = vmatpush1.msra.mxu0 0.0
      %254 = vmatprep.subr.mxu0 0.0
      %255 = vmatpush1.msra.mxu0 0.0
      %256 = vmatprep.subr.mxu0 0.0
      %257 = vmatpush1.msra.mxu0 0.0
      %258 = vmatprep.subr.mxu0 0.0
      %259 = vmatpush1.msra.mxu0 0.0
      %260 = vmatprep.subr.mxu0 0.0
      %261 = vmatpush1.msra.mxu0 0.0
      %262 = vmatprep.subr.mxu0 0.0
      %263 = vmatpush1.msra.mxu0 0.0
      %264 = vmatprep.subr.mxu0 0.0
      %265 = vmatpush1.msra.mxu0 0.0
      %266 = vmatprep.subr.mxu0 0.0
      %267 = vmatpush1.msra.mxu0 0.0
      %268 = vmatprep.subr.mxu0 0.0
      %269 = vmatpush1.msra.mxu0 0.0
      %270 = vmatprep.subr.mxu0 0.0
      %271 = vmatpush1.msra.mxu0 0.0
      %272 = vmatprep.mubr.f32.mxu0 0.0
      %273 = vmatmul.mubr.f32.gmra.mrb[0].mxu0 %v197
      %v274 = vpop.f32.mrb[0].mxu0
      %v275 = vadd.f32 0.0, %v274
      %v276 = vpop.f32.mrb[0].mxu0
      %v277 = vadd.f32 0.0, %v276
      %278 = vmatprep.mubr.f32.mxu0 0.0
      %279 = vmatmul.mubr.f32.gmra.mrb[0].mxu0 %v200
      %v280 = vpop.f32.mrb[0].mxu0
      %v281 = vadd.f32 0.0, %v280
      %v282 = vpop.f32.mrb[0].mxu0
      %v283 = vadd.f32 0.0, %v282
      %284 = vmatprep.mubr.f32.mxu0 0.0
      %285 = vmatmul.mubr.f32.gmra.mrb[0].mxu0 %v203
      %v286 = vpop.f32.mrb[0].mxu0
      %v287 = vadd.f32 0.0, %v286
      %v288 = vpop.f32.mrb[0].mxu0
      %v289 = vadd.f32 0.0, %v288
      %290 = vmatprep.mubr.f32.mxu0 0.0
      %291 = vmatmul.mubr.f32.gmra.mrb[0].mxu0 %v206
      %v292 = vpop.f32.mrb[0].mxu0
      %v293 = vadd.f32 0.0, %v292
      %v294 = vpop.f32.mrb[0].mxu0
      %v295 = vadd.f32 0.0, %v294
      %296 = vdwg.mxu0
      %297 = vst [vmem:[%s181] sm:$0xff] %v275
      %298 = vst [vmem:[%s181 + $0x8] sm:$0xff] %v277
      %299 = vst [vmem:[%s181 + $0x10] sm:$0xff] %v281
      %300 = vst [vmem:[%s181 + $0x18] sm:$0xff] %v283
      %301 = vst [vmem:[%s181 + $0x20] sm:$0xff] %v287
      %302 = vst [vmem:[%s181 + $0x28] sm:$0xff] %v289
      %303 = vst [vmem:[%s181 + $0x30] sm:$0xff] %v293
      %304 = vst [vmem:[%s181 + $0x38] sm:$0xff] %v295
      %s305 = smul.u32 2, %s18
      %p306 = scmp.lt.s32.totalorder %s17, 1
      %s307 = scalar_select %p306, %s17, 1
      %p308 = scmp.lt.s32.totalorder %s305, 1
      %s309 = scalar_select %p308, %s305, 1
      %s310 = smul.addr %s307, 8
      %s311 = sadd.s32 %s309, %s310
      %s312 = smul.addr %s311, 8
      %s313 = scalar_lea.vmem %s2, %s312
      // Predicated region
      $region29: #{dynamics_forward.1} parent=27 // pred_check
        %p314 = pneg %p94
      $region30: #{dynamics_forward.1} parent=27 // pred_check_branch
        %316 = sbr.rel (%p314) target = $region32
      $region31: #{dynamics_forward.1} parent=27 // pred_region
        %s317 = smul.u32 2, %s18
      $region32: #{dynamics_forward.1} parent=27 // pred_fallthru
        _
    $region28: #{dynamics_forward.1} parent=5 // pred_fallthru
      _
    %p318 = scmp.le.s32.totalorder 2, %s8
    // Predicated region
    $region33: #{dynamics_forward.1} parent=5 // pred_check
      %p319 = pneg %p318
    $region34: #{dynamics_forward.1} parent=5 // pred_check_branch
      %321 = sbr.rel (%p319) target = $region36
    $region35: #{dynamics_forward.1} parent=5 // pred_region
      %s322 = ssub.s32 %s8, 2
      // Predicated region
      $region37: #{dynamics_forward.1} parent=35 // pred_check
        %p323 = pneg %p100
      $region38: #{dynamics_forward.1} parent=35 // pred_check_branch
        %325 = sbr.rel (%p323) target = $region40
      $region39: #{dynamics_forward.1} parent=35 // pred_region
        %s326 = smul.u32 2, %s20
        %p327 = scmp.lt.s32.totalorder %s19, 1
        %s328 = scalar_select %p327, %s19, 1
        %p329 = scmp.lt.s32.totalorder %s326, 1
        %s330 = scalar_select %p329, %s326, 1
        %s331 = smul.addr %s328, 8
        %s332 = sadd.s32 %s330, %s331
        %s333 = smul.addr %s332, 8
        %s334 = scalar_lea.vmem %s2, %s333
      $region40: #{dynamics_forward.1} parent=35 // pred_fallthru
        _
    $region36: #{dynamics_forward.1} parent=5 // pred_fallthru
      _
  $region6: #{dynamics_forward.1} parent=0 // loop_footer
    %s12 = sadd.s32 1, %s8
  $region7: #{dynamics_forward.1} parent=0 // loop_footer_branch
    %7 = sbr.rel target = $region3
  $region8: #{dynamics_forward.1} parent=0 // loop_exit
    _

</llo_original>
